<compile_context>
chip_gen: v7x
topology: tpu7x:2x2x1
jax: 0.10.0
libtpu: 0.0.40
codegen_flags: <defaults>
</compile_context>

<pallas_src>
import jax
import jax.numpy as jnp
from jax import lax
from jax.experimental import pallas as pl
from jax.experimental.pallas import tpu as pltpu

CLASS_DIM = 4
NOISE_DIM = 100
IN_DIM = NOISE_DIM + CLASS_DIM        # 104
K_PAD = 128                           # padded contraction dim for the first matmul
H1, H2 = 200, 500
OUT_DIM = 106
OUT_PAD = 128                         # lane-dense padded output dim
EPS = 1e-5
SLOPE = 0.02


def _round_up(x, m):
    return (x + m - 1) // m * m


def _cdiv(a, b):
    return -(-a // b)


def _leaky_relu(x):
    # SLOPE < 1  =>  max(x, SLOPE*x) == LeakyReLU(x); single VALU op.
    return jnp.maximum(x, SLOPE * x)


def _layernorm_noaffine(x):
    # One-pass f32 LayerNorm stats (gamma/beta are folded into the next Linear).
    # mean and mean-of-squares are independent lane reductions (no serial chain).
    mu = jnp.mean(x, axis=-1, keepdims=True)
    ms = jnp.mean(x * x, axis=-1, keepdims=True)
    var = ms - mu * mu
    # Zero-padded batch rows give mu=ms=var=0 exactly -> output 0 (relies on EPS>0);
    # those rows are sliced off after the pallas_call.
    return (x - mu) * lax.rsqrt(var + EPS)


# --------------------------------------------------------------------------- #
# Kernel: whole MLP for one batch tile.  Weights are VMEM-resident (constant
# index_map); activations stream per grid step.  The batch tile is split into
# 2 independent row sub-tiles so MXU work of one sub-tile overlaps the
# VPU/XLU/EUP LayerNorm work of the other.
# --------------------------------------------------------------------------- #
def gender_mlp_kernel(x_ref,                       # (TB, 128)   bf16
                      w1_ref, b1_ref,              # (128, 200) bf16 / (1, 200) f32
                      w2_ref, b2_ref,              # (200, 500) bf16 / (1, 500) f32
                      w3_ref, b3_ref,              # (500, 128) bf16 / (1, 128) f32
                      o_ref):                      # (TB, 128)  f32
    tb = x_ref.shape[0]
    n_sub = 2 if tb % 32 == 0 else 1               # sub-tiles stay multiples of 16
    sub = tb // n_sub

    w1 = w1_ref[...]; b1 = b1_ref[...]
    w2 = w2_ref[...]; b2 = b2_ref[...]
    w3 = w3_ref[...]; b3 = b3_ref[...]

    for s in range(n_sub):                         # static unroll -> co-issue
        lo = s * sub                               # static, tile-aligned slice
        x = x_ref[lo:lo + sub, :]

        h = jnp.dot(x, w1, preferred_element_type=jnp.float32) + b1
        h = _leaky_relu(h)
        h = _layernorm_noaffine(h)                                 # (sub, 200) f32

        h = jnp.dot(h.astype(jnp.bfloat16), w2,
                    preferred_element_type=jnp.float32) + b2
        h = _leaky_relu(h)
        h = _layernorm_noaffine(h)                                 # (sub, 500) f32

        o_ref[lo:lo + sub, :] = jnp.dot(h.astype(jnp.bfloat16), w3,
                                        preferred_element_type=jnp.float32) + b3


# --------------------------------------------------------------------------- #
# Parameter / input preparation (one-time algebraic folding + padding + cast).
# Call prepare_params ONCE and reuse the result across forward calls.
# --------------------------------------------------------------------------- #
def init_params(key):
    ks = jax.random.split(key, 10)
    scale = 0.05
    return {
        "emb": jax.random.normal(ks[0], (CLASS_DIM, CLASS_DIM), jnp.float32),
        # Linear weights stored already transposed to (in, out) for x @ W
        "w1": scale * jax.random.normal(ks[1], (IN_DIM, H1), jnp.float32),
        "b1": 0.1 * jax.random.normal(ks[2], (1, H1), jnp.float32),
        "g1": 1.0 + 0.1 * jax.random.normal(ks[3], (1, H1), jnp.float32),
        "be1": 0.1 * jax.random.normal(ks[4], (1, H1), jnp.float32),
        "w2": scale * jax.random.normal(ks[5], (H1, H2), jnp.float32),
        "b2": 0.1 * jax.random.normal(ks[6], (1, H2), jnp.float32),
        "g2": 1.0 + 0.1 * jax.random.normal(ks[7], (1, H2), jnp.float32),
        "be2": 0.1 * jax.random.normal(ks[8], (1, H2), jnp.float32),
        "w3": scale * jax.random.normal(ks[9], (H2, OUT_DIM), jnp.float32),
        "b3": jnp.zeros((1, OUT_DIM), jnp.float32),
    }


def prepare_params(params):
    """Fold embedding into W1, LN affines into W2/W3, pad K and OUT to 128, cast.

    One-time cost; keep the returned dict around and pass it to
    gender_model_forward for every call.
    """
    w1 = params["w1"]
    emb_proj = params["emb"] @ w1[NOISE_DIM:]                     # (4, 200)
    w1_eff = jnp.zeros((K_PAD, H1), jnp.float32)
    w1_eff = w1_eff.at[:NOISE_DIM].set(w1[:NOISE_DIM])
    w1_eff = w1_eff.at[NOISE_DIM:NOISE_DIM + CLASS_DIM].set(emb_proj)

    w2_eff = params["w2"] * params["g1"].reshape(H1, 1)           # fold LN1 gamma
    b2_eff = params["b2"] + params["be1"] @ params["w2"]          # fold LN1 beta

    w3_pad = jnp.zeros((H2, OUT_PAD), jnp.float32).at[:, :OUT_DIM].set(params["w3"])
    b3_pad = jnp.zeros((1, OUT_PAD), jnp.float32).at[:, :OUT_DIM].set(params["b3"])
    w3_eff = w3_pad * params["g2"].reshape(H2, 1)                 # fold LN2 gamma
    b3_eff = b3_pad + params["be2"] @ w3_pad                      # fold LN2 beta

    return {
        "w1": w1_eff.astype(jnp.bfloat16),
        "b1": params["b1"].astype(jnp.float32),
        "w2": w2_eff.astype(jnp.bfloat16),
        "b2": b2_eff.astype(jnp.float32),
        "w3": w3_eff.astype(jnp.bfloat16),
        "b3": b3_eff.astype(jnp.float32),
    }


def prepare_inputs(noise, labels, b_pad):
    """Build the padded [noise | one_hot(labels) | 0] input, bf16, (b_pad, 128)."""
    B = noise.shape[0]
    onehot = jax.nn.one_hot(labels, CLASS_DIM, dtype=jnp.float32)
    x = jnp.concatenate([noise.astype(jnp.float32), onehot], axis=1)   # (B, 104)
    x = jnp.pad(x, ((0, b_pad - B), (0, K_PAD - IN_DIM)))              # (b_pad, 128)
    return x.astype(jnp.bfloat16)


def _choose_tiling(B, block_b):
    """Batch tile multiple of 16; >=2 blocks when possible (v7x megacore);
    minimal padding waste (<= n_blocks*16 rows)."""
    b16 = _round_up(max(B, 1), 16)
    min_blocks = 2 if b16 >= 32 else 1
    n_blocks = max(_cdiv(b16, block_b), min_blocks)
    tb = _round_up(_cdiv(b16, n_blocks), 16)
    b_pad = n_blocks * tb
    return tb, b_pad, n_blocks


# --------------------------------------------------------------------------- #
# Forward wrapper.  `prepped` = prepare_params(params), computed once.
# --------------------------------------------------------------------------- #
def gender_model_forward(noise, labels, prepped, *, block_b=1024):
    B = noise.shape[0]
    tb, b_pad, n_blocks = _choose_tiling(B, block_b)
    x = prepare_inputs(noise, labels, b_pad)

    weight_bytes = (K_PAD * H1 + H1 * H2 + H2 * OUT_PAD) * 2 \
                   + (H1 + H2 + OUT_PAD) * 4
    cost = pl.CostEstimate(
        flops=2 * b_pad * (K_PAD * H1 + H1 * H2 + H2 * OUT_PAD),
        transcendentals=2 * b_pad,                       # two rsqrt per row
        bytes_accessed=b_pad * K_PAD * 2 + b_pad * OUT_PAD * 4 + weight_bytes,
    )

    out = pl.pallas_call(
        gender_mlp_kernel,
        out_shape=jax.ShapeDtypeStruct((b_pad, OUT_PAD), jnp.float32),
        grid_spec=pltpu.PrefetchScalarGridSpec(
            num_scalar_prefetch=0,
            grid=(n_blocks,),
            in_specs=[
                pl.BlockSpec((tb, K_PAD), lambda i: (i, 0)),       # x: streamed
                pl.BlockSpec((K_PAD, H1), lambda i: (0, 0)),       # weights: resident
                pl.BlockSpec((1, H1), lambda i: (0, 0)),
                pl.BlockSpec((H1, H2), lambda i: (0, 0)),
                pl.BlockSpec((1, H2), lambda i: (0, 0)),
                pl.BlockSpec((H2, OUT_PAD), lambda i: (0, 0)),
                pl.BlockSpec((1, OUT_PAD), lambda i: (0, 0)),
            ],
            out_specs=pl.BlockSpec((tb, OUT_PAD), lambda i: (i, 0)),
        ),
        compiler_params=pltpu.CompilerParams(
            dimension_semantics=("parallel",)),
        cost_estimate=cost,
    )(x, prepped["w1"], prepped["b1"],
      prepped["w2"], prepped["b2"],
      prepped["w3"], prepped["b3"])

    return out[:B, :OUT_DIM]


# --------------------------------------------------------------------------- #
# References.
# --------------------------------------------------------------------------- #
def reference_f32(noise, labels, params):
    """Original PyTorch semantics, pure f32."""
    emb = params["emb"][labels]
    x = jnp.concatenate([noise, emb], axis=1).astype(jnp.float32)
    h = x @ params["w1"] + params["b1"]
    h = jnp.where(h > 0, h, SLOPE * h)
    mu = jnp.mean(h, -1, keepdims=True)
    h = (h - mu) / jnp.sqrt(jnp.mean((h - mu) ** 2, -1, keepdims=True) + EPS)
    h = h * params["g1"] + params["be1"]
    h = h @ params["w2"] + params["b2"]
    h = jnp.where(h > 0, h, SLOPE * h)
    mu = jnp.mean(h, -1, keepdims=True)
    h = (h - mu) / jnp.sqrt(jnp.mean((h - mu) ** 2, -1, keepdims=True) + EPS)
    h = h * params["g2"] + params["be2"]
    return h @ params["w3"] + params["b3"]


def reference_mixed(noise, labels, prepped):
    """Same folded/padded/bf16 math as the kernel, expressed in plain jnp."""
    B = noise.shape[0]
    x = prepare_inputs(noise, labels, _round_up(B, 16))[:B]
    h = jnp.dot(x, prepped["w1"], preferred_element_type=jnp.float32) + prepped["b1"]
    h = _leaky_relu(h)
    h = _layernorm_noaffine(h)
    h = jnp.dot(h.astype(jnp.bfloat16), prepped["w2"],
                preferred_element_type=jnp.float32) + prepped["b2"]
    h = _leaky_relu(h)
    h = _layernorm_noaffine(h)
    out = jnp.dot(h.astype(jnp.bfloat16), prepped["w3"],
                  preferred_element_type=jnp.float32) + prepped["b3"]
    return out[:, :OUT_DIM]


if __name__ == "__main__":
    key = jax.random.PRNGKey(0)
    k_param, k_noise, k_lab, k_noise2, k_lab2 = jax.random.split(key, 5)

    params = init_params(k_param)
    prepped = prepare_params(params)          # hoisted one-time parameter prep

    # --- small batch: single block, single sub-tile -------------------------
    B = 8
    noise = jax.random.normal(k_noise, (B, NOISE_DIM), jnp.float32)
    labels = jax.random.randint(k_lab, (B,), 0, CLASS_DIM)

    fwd = jax.jit(lambda n, l: gender_model_forward(n, l, prepped))
    out = jax.block_until_ready(fwd(noise, labels))
    assert out.shape == (B, OUT_DIM), out.shape

    # Tight check against the identical mixed-precision (bf16-weight) computation.
    ref_mixed = reference_mixed(noise, labels, prepped)
    assert jnp.allclose(out, ref_mixed, atol=2e-2, rtol=2e-2), \
        float(jnp.max(jnp.abs(out - ref_mixed)))

    # Loose sanity check against the original pure-f32 module semantics
    # (bf16 weights introduce a small, bounded mixed-precision error).
    ref_f32 = reference_f32(noise, labels, params)
    assert jnp.allclose(out, ref_f32, atol=0.5, rtol=0.0), \
        float(jnp.max(jnp.abs(out - ref_f32)))

    # --- larger batch: exercises 2 grid blocks + 2 row sub-tiles per block --
    B2 = 40
    noise2 = jax.random.normal(k_noise2, (B2, NOISE_DIM), jnp.float32)
    labels2 = jax.random.randint(k_lab2, (B2,), 0, CLASS_DIM)
    out2 = jax.block_until_ready(gender_model_forward(noise2, labels2, prepped))
    ref2 = reference_mixed(noise2, labels2, prepped)
    assert out2.shape == (B2, OUT_DIM)
    assert jnp.allclose(out2, ref2, atol=2e-2, rtol=2e-2), \
        float(jnp.max(jnp.abs(out2 - ref2)))

    print("KERNEL_OK")
</pallas_src>

<mosaic_0001>
module attributes {stable_mosaic.version = 11 : i64} {
  func.func @gender_mlp_kernel(%arg0: i32, %arg1: memref<16x128xbf16, #tpu.memory_space<vmem>>, %arg2: memref<128x200xbf16, #tpu.memory_space<vmem>>, %arg3: memref<1x200xf32, #tpu.memory_space<vmem>>, %arg4: memref<200x500xbf16, #tpu.memory_space<vmem>>, %arg5: memref<1x500xf32, #tpu.memory_space<vmem>>, %arg6: memref<500x128xbf16, #tpu.memory_space<vmem>>, %arg7: memref<1x128xf32, #tpu.memory_space<vmem>>, %arg8: memref<16x128xf32, #tpu.memory_space<vmem>>) attributes {dimension_semantics = [#tpu.dimension_semantics<parallel>], iteration_bounds = array<i64: 1>, scalar_prefetch = 0 : i64, scratch_operands = 0 : i64, tpu.core_type = #tpu.core_type<tc>, window_params = [{transform_indices = @transform_0, window_bounds = array<i64: 16, 128>}, {pipeline_mode = #tpu.pipeline_mode<synchronous>, transform_indices = @transform_1, window_bounds = array<i64: 128, 200>}, {pipeline_mode = #tpu.pipeline_mode<synchronous>, transform_indices = @transform_2, window_bounds = array<i64: 1, 200>}, {pipeline_mode = #tpu.pipeline_mode<synchronous>, transform_indices = @transform_3, window_bounds = array<i64: 200, 500>}, {pipeline_mode = #tpu.pipeline_mode<synchronous>, transform_indices = @transform_4, window_bounds = array<i64: 1, 500>}, {pipeline_mode = #tpu.pipeline_mode<synchronous>, transform_indices = @transform_5, window_bounds = array<i64: 500, 128>}, {pipeline_mode = #tpu.pipeline_mode<synchronous>, transform_indices = @transform_6, window_bounds = array<i64: 1, 128>}, {transform_indices = @transform_7, window_bounds = array<i64: 16, 128>}]} {
    %c0 = arith.constant 0 : index
    %c0_0 = arith.constant 0 : index
    %0 = vector.load %arg2[%c0, %c0_0] : memref<128x200xbf16, #tpu.memory_space<vmem>>, vector<128x200xbf16>
    %c0_1 = arith.constant 0 : index
    %c0_2 = arith.constant 0 : index
    %1 = vector.load %arg3[%c0_1, %c0_2] : memref<1x200xf32, #tpu.memory_space<vmem>>, vector<1x200xf32>
    %c0_3 = arith.constant 0 : index
    %c0_4 = arith.constant 0 : index
    %2 = vector.load %arg4[%c0_3, %c0_4] : memref<200x500xbf16, #tpu.memory_space<vmem>>, vector<200x500xbf16>
    %c0_5 = arith.constant 0 : index
    %c0_6 = arith.constant 0 : index
    %3 = vector.load %arg5[%c0_5, %c0_6] : memref<1x500xf32, #tpu.memory_space<vmem>>, vector<1x500xf32>
    %c0_7 = arith.constant 0 : index
    %c0_8 = arith.constant 0 : index
    %4 = vector.load %arg6[%c0_7, %c0_8] : memref<500x128xbf16, #tpu.memory_space<vmem>>, vector<500x128xbf16>
    %c0_9 = arith.constant 0 : index
    %c0_10 = arith.constant 0 : index
    %5 = vector.load %arg7[%c0_9, %c0_10] : memref<1x128xf32, #tpu.memory_space<vmem>>, vector<1x128xf32>
    %c0_11 = arith.constant 0 : index
    %c0_12 = arith.constant 0 : index
    %6 = vector.load %arg1[%c0_11, %c0_12] : memref<16x128xbf16, #tpu.memory_space<vmem>>, vector<16x128xbf16>
    %cst = arith.constant dense<0.000000e+00> : vector<16x200xf32>
    %7 = tpu.matmul %6, %0, %cst {dimension_numbers = #tpu.dot_dimension_numbers<[1], [0], [0], [1], [0, 0, 1, 1], [], []>} : vector<16x128xbf16>, vector<128x200xbf16>, vector<16x200xf32> -> vector<16x200xf32>
    %8 = vector.broadcast %1 : vector<1x200xf32> to vector<16x200xf32>
    %9 = arith.addf %7, %8 : vector<16x200xf32>
    %cst_13 = arith.constant 2.000000e-02 : f32
    %10 = vector.broadcast %cst_13 : f32 to vector<16x200xf32>
    %11 = arith.mulf %10, %9 : vector<16x200xf32>
    %12 = arith.maximumf %9, %11 : vector<16x200xf32>
    %cst_14 = arith.constant dense<0.000000e+00> : vector<16xf32>
    %13 = vector.multi_reduction <add>, %12, %cst_14 [1] : vector<16x200xf32> to vector<16xf32>
    %14 = vector.shape_cast %13 : vector<16xf32> to vector<16x1xf32>
    %cst_15 = arith.constant 2.000000e+02 : f32
    %15 = vector.broadcast %cst_15 : f32 to vector<16x1xf32>
    %16 = arith.divf %14, %15 : vector<16x1xf32>
    %17 = arith.mulf %12, %12 : vector<16x200xf32>
    %cst_16 = arith.constant dense<0.000000e+00> : vector<16xf32>
    %18 = vector.multi_reduction <add>, %17, %cst_16 [1] : vector<16x200xf32> to vector<16xf32>
    %19 = vector.shape_cast %18 : vector<16xf32> to vector<16x1xf32>
    %cst_17 = arith.constant 2.000000e+02 : f32
    %20 = vector.broadcast %cst_17 : f32 to vector<16x1xf32>
    %21 = arith.divf %19, %20 : vector<16x1xf32>
    %22 = arith.mulf %16, %16 : vector<16x1xf32>
    %23 = arith.subf %21, %22 : vector<16x1xf32>
    %24 = vector.broadcast %16 : vector<16x1xf32> to vector<16x200xf32>
    %25 = arith.subf %12, %24 : vector<16x200xf32>
    %cst_18 = arith.constant 9.99999974E-6 : f32
    %26 = vector.broadcast %cst_18 : f32 to vector<16x1xf32>
    %27 = arith.addf %23, %26 : vector<16x1xf32>
    %28 = math.rsqrt %27 : vector<16x1xf32>
    %29 = vector.broadcast %28 : vector<16x1xf32> to vector<16x200xf32>
    %30 = arith.mulf %25, %29 : vector<16x200xf32>
    %31 = arith.truncf %30 : vector<16x200xf32> to vector<16x200xbf16>
    %cst_19 = arith.constant dense<0.000000e+00> : vector<16x500xf32>
    %32 = tpu.matmul %31, %2, %cst_19 {dimension_numbers = #tpu.dot_dimension_numbers<[1], [0], [0], [1], [0, 0, 1, 1], [], []>} : vector<16x200xbf16>, vector<200x500xbf16>, vector<16x500xf32> -> vector<16x500xf32>
    %33 = vector.broadcast %3 : vector<1x500xf32> to vector<16x500xf32>
    %34 = arith.addf %32, %33 : vector<16x500xf32>
    %cst_20 = arith.constant 2.000000e-02 : f32
    %35 = vector.broadcast %cst_20 : f32 to vector<16x500xf32>
    %36 = arith.mulf %35, %34 : vector<16x500xf32>
    %37 = arith.maximumf %34, %36 : vector<16x500xf32>
    %cst_21 = arith.constant dense<0.000000e+00> : vector<16xf32>
    %38 = vector.multi_reduction <add>, %37, %cst_21 [1] : vector<16x500xf32> to vector<16xf32>
    %39 = vector.shape_cast %38 : vector<16xf32> to vector<16x1xf32>
    %cst_22 = arith.constant 5.000000e+02 : f32
    %40 = vector.broadcast %cst_22 : f32 to vector<16x1xf32>
    %41 = arith.divf %39, %40 : vector<16x1xf32>
    %42 = arith.mulf %37, %37 : vector<16x500xf32>
    %cst_23 = arith.constant dense<0.000000e+00> : vector<16xf32>
    %43 = vector.multi_reduction <add>, %42, %cst_23 [1] : vector<16x500xf32> to vector<16xf32>
    %44 = vector.shape_cast %43 : vector<16xf32> to vector<16x1xf32>
    %cst_24 = arith.constant 5.000000e+02 : f32
    %45 = vector.broadcast %cst_24 : f32 to vector<16x1xf32>
    %46 = arith.divf %44, %45 : vector<16x1xf32>
    %47 = arith.mulf %41, %41 : vector<16x1xf32>
    %48 = arith.subf %46, %47 : vector<16x1xf32>
    %49 = vector.broadcast %41 : vector<16x1xf32> to vector<16x500xf32>
    %50 = arith.subf %37, %49 : vector<16x500xf32>
    %cst_25 = arith.constant 9.99999974E-6 : f32
    %51 = vector.broadcast %cst_25 : f32 to vector<16x1xf32>
    %52 = arith.addf %48, %51 : vector<16x1xf32>
    %53 = math.rsqrt %52 : vector<16x1xf32>
    %54 = vector.broadcast %53 : vector<16x1xf32> to vector<16x500xf32>
    %55 = arith.mulf %50, %54 : vector<16x500xf32>
    %56 = arith.truncf %55 : vector<16x500xf32> to vector<16x500xbf16>
    %cst_26 = arith.constant dense<0.000000e+00> : vector<16x128xf32>
    %57 = tpu.matmul %56, %4, %cst_26 {dimension_numbers = #tpu.dot_dimension_numbers<[1], [0], [0], [1], [0, 0, 1, 1], [], []>} : vector<16x500xbf16>, vector<500x128xbf16>, vector<16x128xf32> -> vector<16x128xf32>
    %58 = vector.broadcast %5 : vector<1x128xf32> to vector<16x128xf32>
    %59 = arith.addf %57, %58 : vector<16x128xf32>
    %c0_27 = arith.constant 0 : index
    %c0_28 = arith.constant 0 : index
    %60 = vector.load %arg8[%c0_27, %c0_28] : memref<16x128xf32, #tpu.memory_space<vmem>>, vector<16x128xf32>
    tpu.vector_store %arg8[%c0_27, %c0_28], %59 {strides = array<i32>} : memref<16x128xf32, #tpu.memory_space<vmem>>, vector<16x128xf32>,
    return
  }
  func.func @transform_0(%arg0: i32) -> (i32, i32) {
    %c0_i32 = arith.constant 0 : i32
    %c0_i32_0 = arith.constant 0 : i32
    return %arg0, %c0_i32 : i32, i32
  }
  func.func @transform_1(%arg0: i32) -> (i32, i32) {
    %c0_i32 = arith.constant 0 : i32
    %c0_i32_0 = arith.constant 0 : i32
    %c0_i32_1 = arith.constant 0 : i32
    return %c0_i32, %c0_i32_0 : i32, i32
  }
  func.func @transform_2(%arg0: i32) -> (i32, i32) {
    %c0_i32 = arith.constant 0 : i32
    %c0_i32_0 = arith.constant 0 : i32
    %c0_i32_1 = arith.constant 0 : i32
    return %c0_i32, %c0_i32_0 : i32, i32
  }
  func.func @transform_3(%arg0: i32) -> (i32, i32) {
    %c0_i32 = arith.constant 0 : i32
    %c0_i32_0 = arith.constant 0 : i32
    %c0_i32_1 = arith.constant 0 : i32
    return %c0_i32, %c0_i32_0 : i32, i32
  }
  func.func @transform_4(%arg0: i32) -> (i32, i32) {
    %c0_i32 = arith.constant 0 : i32
    %c0_i32_0 = arith.constant 0 : i32
    %c0_i32_1 = arith.constant 0 : i32
    return %c0_i32, %c0_i32_0 : i32, i32
  }
  func.func @transform_5(%arg0: i32) -> (i32, i32) {
    %c0_i32 = arith.constant 0 : i32
    %c0_i32_0 = arith.constant 0 : i32
    %c0_i32_1 = arith.constant 0 : i32
    return %c0_i32, %c0_i32_0 : i32, i32
  }
  func.func @transform_6(%arg0: i32) -> (i32, i32) {
    %c0_i32 = arith.constant 0 : i32
    %c0_i32_0 = arith.constant 0 : i32
    %c0_i32_1 = arith.constant 0 : i32
    return %c0_i32, %c0_i32_0 : i32, i32
  }
  func.func @transform_7(%arg0: i32) -> (i32, i32) {
    %c0_i32 = arith.constant 0 : i32
    %c0_i32_0 = arith.constant 0 : i32
    return %arg0, %c0_i32 : i32, i32
  }
}

</mosaic_0001>

<llo_original>
// kernel: _lambda_.1
$region0: #{_lambda_.1}
  #allocation0 [shape = 'u32[]', space=smem, size = 0x4, offset = 0x4, fixed_abs, tag = 'smem constant byte address 0x4 - core index']
  #allocation1 [shape = 'u32[144,128]{1,0:T(1,128)}', space=vmem, size = 0x12000, scoped, tag = 'internal scratch']
  %s0 = inlined_call_operand.vmem [shape: bf16[16,128], index: 0, kind: input, shape index: {}]
  %s1 = inlined_call_operand.vmem [shape: bf16[128,200], index: 1, kind: input, shape index: {}]
  %s2 = inlined_call_operand.vmem [shape: f32[1,200], index: 2, kind: input, shape index: {}]
  %s3 = inlined_call_operand.hbm [shape: bf16[200,500], index: 3, kind: input, shape index: {}]
  %s4 = inlined_call_operand.vmem [shape: f32[1,500], index: 4, kind: input, shape index: {}]
  %s5 = inlined_call_operand.vmem [shape: bf16[500,128], index: 5, kind: input, shape index: {}]
  %s6 = inlined_call_operand.vmem [shape: f32[1,128], index: 6, kind: input, shape index: {}]
  %s7 = inlined_call_operand.vmem [shape: f32[16,128], index: 7, kind: output, shape index: {}]
  %s8 = sld [smem:[#allocation0]]
  $region42: #{_lambda_.1} parent=0
    _
  %s10 = ssub.s32 1, %s8
  %s11 = scalar_select 0, %s10, %s8
  $region1: #{_lambda_.1} parent=0
    #allocation2 [shape = 'u8[204800]{0}', space=vmem, size = 0x32000, scoped, tag = 'input window, operand 3, single buffered']
    #allocation3 [shape = 's32[1]{0}', space=sflag, size = 0x4, scoped, tag = 'scoped memory for _lambda_.1']
    %12 = vsyncpa [#allocation3], 0
    // Predicated region
    $region2: #{_lambda_.1} parent=1 // pred_check
      _
    $region3: #{_lambda_.1} parent=1 // pred_check_branch
      %14 = sbr.rel (0) target = $region5
    $region4: #{_lambda_.1} parent=1 // pred_region
      _
    $region5: #{_lambda_.1} parent=1 // pred_fallthru
      _
    // Predicated region
    $region6: #{_lambda_.1} parent=1 // pred_check
      _
    $region7: #{_lambda_.1} parent=1 // pred_check_branch
      %16 = sbr.rel (0) target = $region9
    $region8: #{_lambda_.1} parent=1 // pred_region
      _
    $region9: #{_lambda_.1} parent=1 // pred_fallthru
      _
    // Predicated region
    $region10: #{_lambda_.1} parent=1 // pred_check
      _
    $region11: #{_lambda_.1} parent=1 // pred_check_branch
      %18 = sbr.rel (0) target = $region13
    $region12: #{_lambda_.1} parent=1 // pred_region
      _
    $region13: #{_lambda_.1} parent=1 // pred_fallthru
      _
    // Predicated region
    $region14: #{_lambda_.1} parent=1 // pred_check
      _
    $region15: #{_lambda_.1} parent=1 // pred_check_branch
      %20 = sbr.rel (0) target = $region17
    $region16: #{_lambda_.1} parent=1 // pred_region
      %s22 = ssub.s32 6400, 6400
      %23 = vsyncadd [#allocation3], %s22
      %s24 = sshll.u32 [#allocation2], 4
      %s25 = int_to_ptr.vmem [resolvable:$true] %s24
      %30 = dma.hbm_to_vmem [thread:$0]  %s3, 6400, %s25, [#allocation3], 256, 256, 16
    $region17: #{_lambda_.1} parent=1 // pred_fallthru
      _
    // Predicated region
    $region18: #{_lambda_.1} parent=1 // pred_check
      _
    $region19: #{_lambda_.1} parent=1 // pred_check_branch
      %32 = sbr.rel (0) target = $region21
    $region20: #{_lambda_.1} parent=1 // pred_region
      _
    $region21: #{_lambda_.1} parent=1 // pred_fallthru
      _
    // Predicated region
    $region22: #{_lambda_.1} parent=1 // pred_check
      _
    $region23: #{_lambda_.1} parent=1 // pred_check_branch
      %34 = sbr.rel (0) target = $region25
    $region24: #{_lambda_.1} parent=1 // pred_region
      _
    $region25: #{_lambda_.1} parent=1 // pred_fallthru
      _
    // Predicated region
    $region26: #{_lambda_.1} parent=1 // pred_check
      _
    $region27: #{_lambda_.1} parent=1 // pred_check_branch
      %36 = sbr.rel (0) target = $region29
    $region28: #{_lambda_.1} parent=1 // pred_region
      _
    $region29: #{_lambda_.1} parent=1 // pred_fallthru
      _
    // Predicated region
    $region30: #{_lambda_.1} parent=1 // pred_check
      _
    $region31: #{_lambda_.1} parent=1 // pred_check_branch
      %38 = sbr.rel (0) target = $region33
    $region32: #{_lambda_.1} parent=1 // pred_region
      %39 = dma.done [#allocation3], 6400
    $region33: #{_lambda_.1} parent=1 // pred_fallthru
      _
    %v41 = vld [vmem:[%s1] sm:$0xff]
    %v42 = vld [vmem:[%s1 + $0x8] sm:$0xff]
    %v43 = vld [vmem:[%s1 + $0x10] sm:$0xff]
    %v44 = vld [vmem:[%s1 + $0x18] sm:$0xff]
    %v45 = vld [vmem:[%s1 + $0x20] sm:$0xff]
    %v46 = vld [vmem:[%s1 + $0x28] sm:$0xff]
    %v47 = vld [vmem:[%s1 + $0x30] sm:$0xff]
    %v48 = vld [vmem:[%s1 + $0x38] sm:$0xff]
    %v49 = vld [vmem:[%s1 + $0x40] sm:$0xff]
    %v50 = vld [vmem:[%s1 + $0x48] sm:$0xff]
    %v51 = vld [vmem:[%s1 + $0x50] sm:$0xff]
    %v52 = vld [vmem:[%s1 + $0x58] sm:$0xff]
    %v53 = vld [vmem:[%s1 + $0x60] sm:$0xff]
    %v54 = vld [vmem:[%s1 + $0x68] sm:$0xff]
    %v55 = vld [vmem:[%s1 + $0x70] sm:$0xff]
    %v56 = vld [vmem:[%s1 + $0x78] sm:$0xff]
    %v57 = vld [vmem:[%s2] sm:$0x3]
    %v58 = vld [vmem:[#allocation2] sm:$0xff]
    %v59 = vld [vmem:[#allocation2 + $0x8] sm:$0xff]
    %v60 = vld [vmem:[#allocation2 + $0x10] sm:$0xff]
    %v61 = vld [vmem:[#allocation2 + $0x18] sm:$0xff]
    %v62 = vld [vmem:[#allocation2 + $0x20] sm:$0xff]
    %v63 = vld [vmem:[#allocation2 + $0x28] sm:$0xff]
    %v64 = vld [vmem:[#allocation2 + $0x30] sm:$0xff]
    %v65 = vld [vmem:[#allocation2 + $0x38] sm:$0xff]
    %v66 = vld [vmem:[#allocation2 + $0x40] sm:$0xff]
    %v67 = vld [vmem:[#allocation2 + $0x48] sm:$0xff]
    %v68 = vld [vmem:[#allocation2 + $0x50] sm:$0xff]
    %v69 = vld [vmem:[#allocation2 + $0x58] sm:$0xff]
    %v70 = vld [vmem:[#allocation2 + $0x60] sm:$0xff]
    %v71 = vld [vmem:[#allocation2 + $0x68] sm:$0xff]
    %v72 = vld [vmem:[#allocation2 + $0x70] sm:$0xff]
    %v73 = vld [vmem:[#allocation2 + $0x78] sm:$0xff]
    %v74 = vld [vmem:[#allocation2 + $0x80] sm:$0xff]
    %v75 = vld [vmem:[#allocation2 + $0x88] sm:$0xff]
    %v76 = vld [vmem:[#allocation2 + $0x90] sm:$0xff]
    %v77 = vld [vmem:[#allocation2 + $0x98] sm:$0xff]
    %v78 = vld [vmem:[#allocation2 + $0xa0] sm:$0xff]
    %v79 = vld [vmem:[#allocation2 + $0xa8] sm:$0xff]
    %v80 = vld [vmem:[#allocation2 + $0xb0] sm:$0xff]
    %v81 = vld [vmem:[#allocation2 + $0xb8] sm:$0xff]
    %v82 = vld [vmem:[#allocation2 + $0xc0] sm:$0xff]
    %v83 = vld [vmem:[#allocation2 + $0xc8] sm:$0xff]
    %v84 = vld [vmem:[#allocation2 + $0xd0] sm:$0xff]
    %v85 = vld [vmem:[#allocation2 + $0xd8] sm:$0xff]
    %v86 = vld [vmem:[#allocation2 + $0xe0] sm:$0xff]
    %v87 = vld [vmem:[#allocation2 + $0xe8] sm:$0xff]
    %v88 = vld [vmem:[#allocation2 + $0xf0] sm:$0xff]
    %v89 = vld [vmem:[#allocation2 + $0xf8] sm:$0xff]
    %v90 = vld [vmem:[#allocation2 + $0x100] sm:$0xff]
    %v91 = vld [vmem:[#allocation2 + $0x108] sm:$0xff]
    %v92 = vld [vmem:[#allocation2 + $0x110] sm:$0xff]
    %v93 = vld [vmem:[#allocation2 + $0x118] sm:$0xff]
    %v94 = vld [vmem:[#allocation2 + $0x120] sm:$0xff]
    %v95 = vld [vmem:[#allocation2 + $0x128] sm:$0xff]
    %v96 = vld [vmem:[#allocation2 + $0x130] sm:$0xff]
    %v97 = vld [vmem:[#allocation2 + $0x138] sm:$0xff]
    %v98 = vld [vmem:[#allocation2 + $0x140] sm:$0xff]
    %v99 = vld [vmem:[#allocation2 + $0x148] sm:$0xff]
    %v100 = vld [vmem:[#allocation2 + $0x150] sm:$0xff]
    %v101 = vld [vmem:[#allocation2 + $0x158] sm:$0xff]
    %v102 = vld [vmem:[#allocation2 + $0x160] sm:$0xff]
    %v103 = vld [vmem:[#allocation2 + $0x168] sm:$0xff]
    %v104 = vld [vmem:[#allocation2 + $0x170] sm:$0xff]
    %v105 = vld [vmem:[#allocation2 + $0x178] sm:$0xff]
    %v106 = vld [vmem:[#allocation2 + $0x180] sm:$0xff]
    %v107 = vld [vmem:[#allocation2 + $0x188] sm:$0xff]
    %v108 = vld [vmem:[%s4] sm:$0xf]
    %v109 = vld [vmem:[%s5] sm:$0xf]
    %v110 = vld [vmem:[%s5 + $0x4] sm:$0xf]
    %v111 = vld [vmem:[%s5 + $0x8] sm:$0xf]
    %v112 = vld [vmem:[%s5 + $0xc] sm:$0xf]
    %v113 = vld [vmem:[%s5 + $0x10] sm:$0xf]
    %v114 = vld [vmem:[%s5 + $0x14] sm:$0xf]
    %v115 = vld [vmem:[%s5 + $0x18] sm:$0xf]
    %v116 = vld [vmem:[%s5 + $0x1c] sm:$0xf]
    %v117 = vld [vmem:[%s5 + $0x20] sm:$0xf]
    %v118 = vld [vmem:[%s5 + $0x24] sm:$0xf]
    %v119 = vld [vmem:[%s5 + $0x28] sm:$0xf]
    %v120 = vld [vmem:[%s5 + $0x2c] sm:$0xf]
    %v121 = vld [vmem:[%s5 + $0x30] sm:$0xf]
    %v122 = vld [vmem:[%s5 + $0x34] sm:$0xf]
    %v123 = vld [vmem:[%s5 + $0x38] sm:$0xf]
    %v124 = vld [vmem:[%s5 + $0x3c] sm:$0xf]
    %v125 = vld [vmem:[%s5 + $0x40] sm:$0xf]
    %v126 = vld [vmem:[%s5 + $0x44] sm:$0xf]
    %v127 = vld [vmem:[%s5 + $0x48] sm:$0xf]
    %v128 = vld [vmem:[%s5 + $0x4c] sm:$0xf]
    %v129 = vld [vmem:[%s5 + $0x50] sm:$0xf]
    %v130 = vld [vmem:[%s5 + $0x54] sm:$0xf]
    %v131 = vld [vmem:[%s5 + $0x58] sm:$0xf]
    %v132 = vld [vmem:[%s5 + $0x5c] sm:$0xf]
    %v133 = vld [vmem:[%s5 + $0x60] sm:$0xf]
    %v134 = vld [vmem:[%s5 + $0x64] sm:$0xf]
    %v135 = vld [vmem:[%s5 + $0x68] sm:$0xf]
    %v136 = vld [vmem:[%s5 + $0x6c] sm:$0xf]
    %v137 = vld [vmem:[%s5 + $0x70] sm:$0xf]
    %v138 = vld [vmem:[%s5 + $0x74] sm:$0xf]
    %v139 = vld [vmem:[%s5 + $0x78] sm:$0xf]
    %v140 = vld [vmem:[%s5 + $0x7c] sm:$0xf]
    %v141 = vld [vmem:[%s5 + $0x80] sm:$0xf]
    %v142 = vld [vmem:[%s5 + $0x84] sm:$0xf]
    %v143 = vld [vmem:[%s5 + $0x88] sm:$0xf]
    %v144 = vld [vmem:[%s5 + $0x8c] sm:$0xf]
    %v145 = vld [vmem:[%s5 + $0x90] sm:$0xf]
    %v146 = vld [vmem:[%s5 + $0x94] sm:$0xf]
    %v147 = vld [vmem:[%s5 + $0x98] sm:$0xf]
    %v148 = vld [vmem:[%s5 + $0x9c] sm:$0xf]
    %v149 = vld [vmem:[%s5 + $0xa0] sm:$0xf]
    %v150 = vld [vmem:[%s5 + $0xa4] sm:$0xf]
    %v151 = vld [vmem:[%s5 + $0xa8] sm:$0xf]
    %v152 = vld [vmem:[%s5 + $0xac] sm:$0xf]
    %v153 = vld [vmem:[%s5 + $0xb0] sm:$0xf]
    %v154 = vld [vmem:[%s5 + $0xb4] sm:$0xf]
    %v155 = vld [vmem:[%s5 + $0xb8] sm:$0xf]
    %v156 = vld [vmem:[%s5 + $0xbc] sm:$0xf]
    %v157 = vld [vmem:[%s5 + $0xc0] sm:$0xf]
    %v158 = vld [vmem:[%s5 + $0xc4] sm:$0xf]
    %v159 = vld [vmem:[%s5 + $0xc8] sm:$0xf]
    %v160 = vld [vmem:[%s5 + $0xcc] sm:$0xf]
    %v161 = vld [vmem:[%s5 + $0xd0] sm:$0xf]
    %v162 = vld [vmem:[%s5 + $0xd4] sm:$0xf]
    %v163 = vld [vmem:[%s5 + $0xd8] sm:$0xf]
    %v164 = vld [vmem:[%s5 + $0xdc] sm:$0xf]
    %v165 = vld [vmem:[%s5 + $0xe0] sm:$0xf]
    %v166 = vld [vmem:[%s5 + $0xe4] sm:$0xf]
    %v167 = vld [vmem:[%s5 + $0xe8] sm:$0xf]
    %v168 = vld [vmem:[%s5 + $0xec] sm:$0xf]
    %v169 = vld [vmem:[%s5 + $0xf0] sm:$0xf]
    %v170 = vld [vmem:[%s5 + $0xf4] sm:$0xf]
    %v171 = vld [vmem:[%s5 + $0xf8] sm:$0x3]
    %v172 = vld [vmem:[%s6] sm:$0x1]
    %v173 = vld [vmem:[%s0] sm:$0xf]
    %v174 = vld [vmem:[%s0 + $0x4] sm:$0xf]
    %v176 = vlaneseq
    %v177 = vshrl.u32 %v176, 7
    %v178 = vsub.s32 0, %v177
    %v179 = vrot.slane %v57, %v178
    %v180 = vlaneseq
    %v181 = vshrl.u32 %v180, 7
    %v182 = vsub.s32 1, %v181
    %v183 = vrot.slane %v57, %v182
    %v188 = vunpack.c.l.b16 %v173
    %v189 = vunpack.c.l.b16 %v174
    %v190 = vpack.c.b16 %v189, %v188
    %v208 = vunpack.c.l.b16 %v41
    %v209 = vunpack.c.h.b16 %v41
    %v210 = vunpack.c.l.b16 %v42
    %v211 = vunpack.c.h.b16 %v42
    %v212 = vunpack.c.l.b16 %v43
    %v213 = vunpack.c.h.b16 %v43
    %v214 = vunpack.c.l.b16 %v44
    %v215 = vunpack.c.h.b16 %v44
    %v216 = vunpack.c.l.b16 %v45
    %v217 = vunpack.c.h.b16 %v45
    %v218 = vunpack.c.l.b16 %v46
    %v219 = vunpack.c.h.b16 %v46
    %v220 = vunpack.c.l.b16 %v47
    %v221 = vunpack.c.h.b16 %v47
    %v222 = vunpack.c.l.b16 %v48
    %v223 = vunpack.c.h.b16 %v48
    %v224 = vunpack.c.l.b16 %v49
    %v225 = vunpack.c.h.b16 %v49
    %v226 = vunpack.c.l.b16 %v50
    %v227 = vunpack.c.h.b16 %v50
    %v228 = vunpack.c.l.b16 %v51
    %v229 = vunpack.c.h.b16 %v51
    %v230 = vunpack.c.l.b16 %v52
    %v231 = vunpack.c.h.b16 %v52
    %v232 = vunpack.c.l.b16 %v53
    %v233 = vunpack.c.h.b16 %v53
    %v234 = vunpack.c.l.b16 %v54
    %v235 = vunpack.c.h.b16 %v54
    %v236 = vunpack.c.l.b16 %v55
    %v237 = vunpack.c.h.b16 %v55
    %v238 = vunpack.c.l.b16 %v56
    %v239 = vunpack.c.h.b16 %v56
    %v240 = vpack.c.b16 %v210, %v208
    %v241 = vpack.c.b16 %v211, %v209
    %v242 = vpack.c.b16 %v214, %v212
    %v243 = vpack.c.b16 %v215, %v213
    %v244 = vpack.c.b16 %v218, %v216
    %v245 = vpack.c.b16 %v219, %v217
    %v246 = vpack.c.b16 %v222, %v220
    %v247 = vpack.c.b16 %v223, %v221
    %v248 = vpack.c.b16 %v226, %v224
    %v249 = vpack.c.b16 %v227, %v225
    %v250 = vpack.c.b16 %v230, %v228
    %v251 = vpack.c.b16 %v231, %v229
    %v252 = vpack.c.b16 %v234, %v232
    %v253 = vpack.c.b16 %v235, %v233
    %v254 = vpack.c.b16 %v238, %v236
    %v255 = vpack.c.b16 %v239, %v237
    %272 = vmatprep.subr.bf16.mxu0 %v241
    %273 = vmatpush1.bf16.msra.mxu0 %v240
    %274 = vmatprep.subr.bf16.mxu0 %v243
    %275 = vmatpush1.bf16.msra.mxu0 %v242
    %276 = vmatprep.subr.bf16.mxu0 %v245
    %277 = vmatpush1.bf16.msra.mxu0 %v244
    %278 = vmatprep.subr.bf16.mxu0 %v247
    %279 = vmatpush1.bf16.msra.mxu0 %v246
    %280 = vmatprep.subr.bf16.mxu0 %v249
    %281 = vmatpush1.bf16.msra.mxu0 %v248
    %282 = vmatprep.subr.bf16.mxu0 %v251
    %283 = vmatpush1.bf16.msra.mxu0 %v250
    %284 = vmatprep.subr.bf16.mxu0 %v253
    %285 = vmatpush1.bf16.msra.mxu0 %v252
    %286 = vmatprep.subr.bf16.mxu0 %v255
    %287 = vmatpush1.bf16.msra.mxu0 %v254
    %288 = vmatprep.subr.bf16.mxu0 0
    %289 = vmatpush1.bf16.msra.mxu0 0
    %290 = vmatprep.subr.bf16.mxu0 0
    %291 = vmatpush1.bf16.msra.mxu0 0
    %292 = vmatprep.subr.bf16.mxu0 0
    %293 = vmatpush1.bf16.msra.mxu0 0
    %294 = vmatprep.subr.bf16.mxu0 0
    %295 = vmatpush1.bf16.msra.mxu0 0
    %296 = vmatprep.subr.bf16.mxu0 0
    %297 = vmatpush1.bf16.msra.mxu0 0
    %298 = vmatprep.subr.bf16.mxu0 0
    %299 = vmatpush1.bf16.msra.mxu0 0
    %300 = vmatprep.subr.bf16.mxu0 0
    %301 = vmatpush1.bf16.msra.mxu0 0
    %302 = vmatprep.subr.bf16.mxu0 0
    %303 = vmatpush1.bf16.msra.mxu0 0
    %304 = vmatprep.mubr.bf16.mxu0 0
    %305 = vmatmul.mubr.bf16.gmra.mrb[0].mxu0 %v190
    %v306 = vpop.f32.mrb[0].mxu0
    %v307 = vadd.f32 %v179, %v306
    %v308 = vpop.f32.mrb[0].mxu0
    %v309 = vadd.f32 %v183, %v308
    %v310 = vpop.f32.mrb[0].mxu0
    %v311 = vadd.f32 %v179, %v310
    %v312 = vpop.f32.mrb[0].mxu0
    %v313 = vadd.f32 %v183, %v312
    %314 = vdwg.mxu0
    %v315 = vmul.f32 %v307, 0.02
    %v316 = vmul.f32 %v309, 0.02
    %v317 = vmul.f32 %v311, 0.02
    %v318 = vmul.f32 %v313, 0.02
    %v319 = vmax.f32 %v307, %v315
    %v320 = vmax.f32 %v309, %v316
    %v321 = vmax.f32 %v311, %v317
    %v322 = vmax.f32 %v313, %v318
    %vm323 = vcmask 588800
    %v324 = vsel %vm323, %v320, 0.0
    %v325 = vadd.f32 %v319, %v324
    %326 = vadd.xlane.f32.xlu0 %v325
    %v327 = vpop.xlane.xlu0 %326
    %v328 = vsel %vm323, %v322, 0.0
    %v329 = vadd.f32 %v321, %v328
    %330 = vadd.xlane.f32.xlu0 %v329
    %v331 = vpop.xlane.xlu0 %330
    %v332 = vrcp.pop 200.0
    %v333 = vmul.f32 %v327, %v332
    %v334 = vmul.f32 %v331, %v332
    %v335 = vmul.f32 %v319, %v319
    %v336 = vmul.f32 %v320, %v320
    %v337 = vmul.f32 %v321, %v321
    %v338 = vmul.f32 %v322, %v322
    %v339 = vsel %vm323, %v336, 0.0
    %v340 = vadd.f32 %v335, %v339
    %341 = vadd.xlane.f32.xlu0 %v340
    %v342 = vpop.xlane.xlu0 %341
    %v343 = vsel %vm323, %v338, 0.0
    %v344 = vadd.f32 %v337, %v343
    %345 = vadd.xlane.f32.xlu0 %v344
    %v346 = vpop.xlane.xlu0 %345
    %v347 = vmul.f32 %v342, %v332
    %v348 = vmul.f32 %v346, %v332
    %v349 = vmul.f32 %v333, %v333
    %v350 = vmul.f32 %v334, %v334
    %v351 = vsub.f32 %v347, %v349
    %v352 = vsub.f32 %v348, %v350
    %v353 = vsub.f32 %v319, %v333
    %v354 = vsub.f32 %v320, %v333
    %v355 = vsub.f32 %v321, %v334
    %v356 = vsub.f32 %v322, %v334
    %v357 = vadd.f32 %v351, 1e-05
    %v358 = vadd.f32 %v352, 1e-05
    %v359 = vrsqrt.pop %v357
    %v360 = vrsqrt.pop %v358
    %v361 = vmul.f32 %v353, %v359
    %v362 = vmul.f32 %v354, %v359
    %v363 = vmul.f32 %v355, %v360
    %v364 = vmul.f32 %v356, %v360
    %v365 = vpack.c.bf16 %v363, %v361
    %v366 = vpack.c.bf16 %v364, %v362
    %v368 = vlaneseq
    %v369 = vshrl.u32 %v368, 7
    %v370 = vsub.s32 0, %v369
    %v371 = vrot.slane %v108, %v370
    %v372 = vlaneseq
    %v373 = vshrl.u32 %v372, 7
    %v374 = vsub.s32 1, %v373
    %v375 = vrot.slane %v108, %v374
    %v376 = vlaneseq
    %v377 = vshrl.u32 %v376, 7
    %v378 = vsub.s32 2, %v377
    %v379 = vrot.slane %v108, %v378
    %v380 = vlaneseq
    %v381 = vshrl.u32 %v380, 7
    %v382 = vsub.s32 3, %v381
    %v383 = vrot.slane %v108, %v382
    %v438 = vunpack.c.l.b16 %v58
    %v439 = vunpack.c.h.b16 %v58
    %v440 = vunpack.c.l.b16 %v59
    %v441 = vunpack.c.h.b16 %v59
    %v442 = vunpack.c.l.b16 %v60
    %v443 = vunpack.c.h.b16 %v60
    %v444 = vunpack.c.l.b16 %v61
    %v445 = vunpack.c.h.b16 %v61
    %v446 = vunpack.c.l.b16 %v62
    %v447 = vunpack.c.h.b16 %v62
    %v448 = vunpack.c.l.b16 %v63
    %v449 = vunpack.c.h.b16 %v63
    %v450 = vunpack.c.l.b16 %v64
    %v451 = vunpack.c.h.b16 %v64
    %v452 = vunpack.c.l.b16 %v65
    %v453 = vunpack.c.h.b16 %v65
    %v454 = vunpack.c.l.b16 %v66
    %v455 = vunpack.c.h.b16 %v66
    %v456 = vunpack.c.l.b16 %v67
    %v457 = vunpack.c.h.b16 %v67
    %v458 = vunpack.c.l.b16 %v68
    %v459 = vunpack.c.h.b16 %v68
    %v460 = vunpack.c.l.b16 %v69
    %v461 = vunpack.c.h.b16 %v69
    %v462 = vunpack.c.l.b16 %v70
    %v463 = vunpack.c.h.b16 %v70
    %v464 = vunpack.c.l.b16 %v71
    %v465 = vunpack.c.h.b16 %v71
    %v466 = vunpack.c.l.b16 %v72
    %v467 = vunpack.c.h.b16 %v72
    %v468 = vunpack.c.l.b16 %v73
    %v469 = vunpack.c.h.b16 %v73
    %v470 = vunpack.c.l.b16 %v74
    %v471 = vunpack.c.h.b16 %v74
    %v472 = vunpack.c.l.b16 %v75
    %v473 = vunpack.c.h.b16 %v75
    %v474 = vunpack.c.l.b16 %v76
    %v475 = vunpack.c.h.b16 %v76
    %v476 = vunpack.c.l.b16 %v77
    %v477 = vunpack.c.h.b16 %v77
    %v478 = vunpack.c.l.b16 %v78
    %v479 = vunpack.c.h.b16 %v78
    %v480 = vunpack.c.l.b16 %v79
    %v481 = vunpack.c.h.b16 %v79
    %v482 = vunpack.c.l.b16 %v80
    %v483 = vunpack.c.h.b16 %v80
    %v484 = vunpack.c.l.b16 %v81
    %v485 = vunpack.c.h.b16 %v81
    %v486 = vunpack.c.l.b16 %v82
    %v487 = vunpack.c.h.b16 %v82
    %v488 = vunpack.c.l.b16 %v83
    %v489 = vunpack.c.h.b16 %v83
    %v490 = vunpack.c.l.b16 %v84
    %v491 = vunpack.c.h.b16 %v84
    %v492 = vunpack.c.l.b16 %v85
    %v493 = vunpack.c.h.b16 %v85
    %v494 = vunpack.c.l.b16 %v86
    %v495 = vunpack.c.h.b16 %v86
    %v496 = vunpack.c.l.b16 %v87
    %v497 = vunpack.c.h.b16 %v87
    %v498 = vunpack.c.l.b16 %v88
    %v499 = vunpack.c.h.b16 %v88
    %v500 = vunpack.c.l.b16 %v89
    %v501 = vunpack.c.h.b16 %v89
    %v502 = vunpack.c.l.b16 %v90
    %v503 = vunpack.c.h.b16 %v90
    %v504 = vunpack.c.l.b16 %v91
    %v505 = vunpack.c.h.b16 %v91
    %v506 = vunpack.c.l.b16 %v92
    %v507 = vunpack.c.h.b16 %v92
    %v508 = vunpack.c.l.b16 %v93
    %v509 = vunpack.c.h.b16 %v93
    %v510 = vunpack.c.l.b16 %v94
    %v511 = vunpack.c.h.b16 %v94
    %v512 = vunpack.c.l.b16 %v95
    %v513 = vunpack.c.h.b16 %v95
    %v514 = vunpack.c.l.b16 %v96
    %v515 = vunpack.c.h.b16 %v96
    %v516 = vunpack.c.l.b16 %v97
    %v517 = vunpack.c.h.b16 %v97
    %v518 = vunpack.c.l.b16 %v98
    %v519 = vunpack.c.h.b16 %v98
    %v520 = vunpack.c.l.b16 %v99
    %v521 = vunpack.c.h.b16 %v99
    %v522 = vunpack.c.l.b16 %v100
    %v523 = vunpack.c.h.b16 %v100
    %v524 = vunpack.c.l.b16 %v101
    %v525 = vunpack.c.h.b16 %v101
    %v526 = vunpack.c.l.b16 %v102
    %v527 = vunpack.c.h.b16 %v102
    %v528 = vunpack.c.l.b16 %v103
    %v529 = vunpack.c.h.b16 %v103
    %v530 = vunpack.c.l.b16 %v104
    %v531 = vunpack.c.h.b16 %v104
    %v532 = vunpack.c.l.b16 %v105
    %v533 = vunpack.c.h.b16 %v105
    %v534 = vunpack.c.l.b16 %v106
    %v535 = vunpack.c.h.b16 %v106
    %v536 = vunpack.c.l.b16 %v107
    %v537 = vunpack.c.h.b16 %v107
    %v538 = vpack.c.b16 %v442, %v438
    %v539 = vpack.c.b16 %v443, %v439
    %v540 = vpack.c.b16 %v444, %v440
    %v541 = vpack.c.b16 %v445, %v441
    %v542 = vpack.c.b16 %v450, %v446
    %v543 = vpack.c.b16 %v451, %v447
    %v544 = vpack.c.b16 %v452, %v448
    %v545 = vpack.c.b16 %v453, %v449
    %v546 = vpack.c.b16 %v458, %v454
    %v547 = vpack.c.b16 %v459, %v455
    %v548 = vpack.c.b16 %v460, %v456
    %v549 = vpack.c.b16 %v461, %v457
    %v550 = vpack.c.b16 %v466, %v462
    %v551 = vpack.c.b16 %v467, %v463
    %v552 = vpack.c.b16 %v468, %v464
    %v553 = vpack.c.b16 %v469, %v465
    %v554 = vpack.c.b16 %v474, %v470
    %v555 = vpack.c.b16 %v475, %v471
    %v556 = vpack.c.b16 %v476, %v472
    %v557 = vpack.c.b16 %v477, %v473
    %v558 = vpack.c.b16 %v482, %v478
    %v559 = vpack.c.b16 %v483, %v479
    %v560 = vpack.c.b16 %v484, %v480
    %v561 = vpack.c.b16 %v485, %v481
    %v562 = vpack.c.b16 %v490, %v486
    %v563 = vpack.c.b16 %v491, %v487
    %v564 = vpack.c.b16 %v492, %v488
    %v565 = vpack.c.b16 %v493, %v489
    %v566 = vpack.c.b16 %v498, %v494
    %v567 = vpack.c.b16 %v499, %v495
    %v568 = vpack.c.b16 %v500, %v496
    %v569 = vpack.c.b16 %v501, %v497
    %v570 = vpack.c.b16 %v506, %v502
    %v571 = vpack.c.b16 %v507, %v503
    %v572 = vpack.c.b16 %v508, %v504
    %v573 = vpack.c.b16 %v509, %v505
    %v574 = vpack.c.b16 %v514, %v510
    %v575 = vpack.c.b16 %v515, %v511
    %v576 = vpack.c.b16 %v516, %v512
    %v577 = vpack.c.b16 %v517, %v513
    %v578 = vpack.c.b16 %v522, %v518
    %v579 = vpack.c.b16 %v523, %v519
    %v580 = vpack.c.b16 %v524, %v520
    %v581 = vpack.c.b16 %v525, %v521
    %v582 = vpack.c.b16 %v530, %v526
    %v583 = vpack.c.b16 %v531, %v527
    %v584 = vpack.c.b16 %v532, %v528
    %v585 = vpack.c.b16 %v533, %v529
    %v586 = vpack.c.b16 %v534, %v534
    %v587 = vpack.c.b16 %v535, %v535
    %v588 = vpack.c.b16 %v536, %v536
    %v589 = vpack.c.b16 %v537, %v537
    %v639 = vsel %vm323, %v366, 0
    %vm641 = vcmask 1043456
    %v643 = vsel %vm641, %v586, 0
    %v646 = vsel %vm641, %v587, 0
    %v649 = vsel %vm641, %v588, 0
    %v652 = vsel %vm641, %v589, 0
    %654 = vmatprep.subr.bf16.mxu0 %v539
    %655 = vmatpush1.bf16.msra.mxu0 %v538
    %656 = vmatprep.subr.bf16.mxu0 %v543
    %657 = vmatpush1.bf16.msra.mxu0 %v542
    %658 = vmatprep.subr.bf16.mxu0 %v547
    %659 = vmatpush1.bf16.msra.mxu0 %v546
    %660 = vmatprep.subr.bf16.mxu0 %v551
    %661 = vmatpush1.bf16.msra.mxu0 %v550
    %662 = vmatprep.subr.bf16.mxu0 %v555
    %663 = vmatpush1.bf16.msra.mxu0 %v554
    %664 = vmatprep.subr.bf16.mxu0 %v559
    %665 = vmatpush1.bf16.msra.mxu0 %v558
    %666 = vmatprep.subr.bf16.mxu0 %v563
    %667 = vmatpush1.bf16.msra.mxu0 %v562
    %668 = vmatprep.subr.bf16.mxu0 %v567
    %669 = vmatpush1.bf16.msra.mxu0 %v566
    %670 = vmatprep.subr.bf16.mxu0 %v571
    %671 = vmatpush1.bf16.msra.mxu0 %v570
    %672 = vmatprep.subr.bf16.mxu0 %v575
    %673 = vmatpush1.bf16.msra.mxu0 %v574
    %674 = vmatprep.subr.bf16.mxu0 %v579
    %675 = vmatpush1.bf16.msra.mxu0 %v578
    %676 = vmatprep.subr.bf16.mxu0 %v583
    %677 = vmatpush1.bf16.msra.mxu0 %v582
    %678 = vmatprep.subr.bf16.mxu0 %v646
    %679 = vmatpush1.bf16.msra.mxu0 %v643
    %680 = vmatprep.subr.bf16.mxu0 0
    %681 = vmatpush1.bf16.msra.mxu0 0
    %682 = vmatprep.subr.bf16.mxu0 0
    %683 = vmatpush1.bf16.msra.mxu0 0
    %684 = vmatprep.subr.bf16.mxu0 0
    %685 = vmatpush1.bf16.msra.mxu0 0
    %686 = vmatprep.mubr.bf16.mxu0 %v639
    %687 = vmatmul.mubr.bf16.gmra.mrb[0].mxu0 %v365
    %v688 = vpop.f32.mrb[0].mxu0
    %v689 = vadd.f32 %v371, %v688
    %v690 = vpop.f32.mrb[0].mxu0
    %v691 = vadd.f32 %v375, %v690
    %v692 = vpop.f32.mrb[0].mxu0
    %v693 = vadd.f32 %v371, %v692
    %v694 = vpop.f32.mrb[0].mxu0
    %v695 = vadd.f32 %v375, %v694
    %696 = vdwg.mxu0
    %697 = vmatprep.subr.bf16.mxu0 %v541
    %698 = vmatpush1.bf16.msra.mxu0 %v540
    %699 = vmatprep.subr.bf16.mxu0 %v545
    %700 = vmatpush1.bf16.msra.mxu0 %v544
    %701 = vmatprep.subr.bf16.mxu0 %v549
    %702 = vmatpush1.bf16.msra.mxu0 %v548
    %703 = vmatprep.subr.bf16.mxu0 %v553
    %704 = vmatpush1.bf16.msra.mxu0 %v552
    %705 = vmatprep.subr.bf16.mxu0 %v557
    %706 = vmatpush1.bf16.msra.mxu0 %v556
    %707 = vmatprep.subr.bf16.mxu0 %v561
    %708 = vmatpush1.bf16.msra.mxu0 %v560
    %709 = vmatprep.subr.bf16.mxu0 %v565
    %710 = vmatpush1.bf16.msra.mxu0 %v564
    %711 = vmatprep.subr.bf16.mxu0 %v569
    %712 = vmatpush1.bf16.msra.mxu0 %v568
    %713 = vmatprep.subr.bf16.mxu0 %v573
    %714 = vmatpush1.bf16.msra.mxu0 %v572
    %715 = vmatprep.subr.bf16.mxu0 %v577
    %716 = vmatpush1.bf16.msra.mxu0 %v576
    %717 = vmatprep.subr.bf16.mxu0 %v581
    %718 = vmatpush1.bf16.msra.mxu0 %v580
    %719 = vmatprep.subr.bf16.mxu0 %v585
    %720 = vmatpush1.bf16.msra.mxu0 %v584
    %721 = vmatprep.subr.bf16.mxu0 %v652
    %722 = vmatpush1.bf16.msra.mxu0 %v649
    %723 = vmatprep.subr.bf16.mxu0 0
    %724 = vmatpush1.bf16.msra.mxu0 0
    %725 = vmatprep.subr.bf16.mxu0 0
    %726 = vmatpush1.bf16.msra.mxu0 0
    %727 = vmatprep.subr.bf16.mxu0 0
    %728 = vmatpush1.bf16.msra.mxu0 0
    %729 = vmatprep.mubr.bf16.mxu0 %v639
    %730 = vmatmul.mubr.bf16.gmra.mrb[0].mxu0 %v365
    %v731 = vpop.f32.mrb[0].mxu0
    %v732 = vadd.f32 %v379, %v731
    %v733 = vpop.f32.mrb[0].mxu0
    %v734 = vadd.f32 %v383, %v733
    %v735 = vpop.f32.mrb[0].mxu0
    %v736 = vadd.f32 %v379, %v735
    %v737 = vpop.f32.mrb[0].mxu0
    %v738 = vadd.f32 %v383, %v737
    %739 = vdwg.mxu0
    %v740 = vmul.f32 %v689, 0.02
    %v741 = vmul.f32 %v691, 0.02
    %v742 = vmul.f32 %v732, 0.02
    %v743 = vmul.f32 %v734, 0.02
    %v744 = vmul.f32 %v693, 0.02
    %v745 = vmul.f32 %v695, 0.02
    %v746 = vmul.f32 %v736, 0.02
    %v747 = vmul.f32 %v738, 0.02
    %v748 = vmax.f32 %v689, %v740
    %v749 = vmax.f32 %v691, %v741
    %v750 = vmax.f32 %v732, %v742
    %v751 = vmax.f32 %v734, %v743
    %v752 = vmax.f32 %v693, %v744
    %v753 = vmax.f32 %v695, %v745
    %v754 = vmax.f32 %v736, %v746
    %v755 = vmax.f32 %v738, %v747
    %v756 = vadd.f32 %v748, %v749
    %v757 = vadd.f32 %v756, %v750
    %vm758 = vcmask 949248
    %v759 = vsel %vm758, %v751, 0.0
    %v760 = vadd.f32 %v757, %v759
    %761 = vadd.xlane.f32.xlu0 %v760
    %v762 = vpop.xlane.xlu0 %761
    %v763 = vadd.f32 %v752, %v753
    %v764 = vadd.f32 %v763, %v754
    %v765 = vsel %vm758, %v755, 0.0
    %v766 = vadd.f32 %v764, %v765
    %767 = vadd.xlane.f32.xlu0 %v766
    %v768 = vpop.xlane.xlu0 %767
    %v769 = vrcp.pop 500.0
    %v770 = vmul.f32 %v762, %v769
    %v771 = vmul.f32 %v768, %v769
    %v772 = vmul.f32 %v748, %v748
    %v773 = vmul.f32 %v749, %v749
    %v774 = vmul.f32 %v750, %v750
    %v775 = vmul.f32 %v751, %v751
    %v776 = vmul.f32 %v752, %v752
    %v777 = vmul.f32 %v753, %v753
    %v778 = vmul.f32 %v754, %v754
    %v779 = vmul.f32 %v755, %v755
    %v780 = vadd.f32 %v772, %v773
    %v781 = vadd.f32 %v780, %v774
    %v782 = vsel %vm758, %v775, 0.0
    %v783 = vadd.f32 %v781, %v782
    %784 = vadd.xlane.f32.xlu0 %v783
    %v785 = vpop.xlane.xlu0 %784
    %v786 = vadd.f32 %v776, %v777
    %v787 = vadd.f32 %v786, %v778
    %v788 = vsel %vm758, %v779, 0.0
    %v789 = vadd.f32 %v787, %v788
    %790 = vadd.xlane.f32.xlu0 %v789
    %v791 = vpop.xlane.xlu0 %790
    %v792 = vmul.f32 %v785, %v769
    %v793 = vmul.f32 %v791, %v769
    %v794 = vmul.f32 %v770, %v770
    %v795 = vmul.f32 %v771, %v771
    %v796 = vsub.f32 %v792, %v794
    %v797 = vsub.f32 %v793, %v795
    %v798 = vsub.f32 %v748, %v770
    %v799 = vsub.f32 %v749, %v770
    %v800 = vsub.f32 %v750, %v770
    %v801 = vsub.f32 %v751, %v770
    %v802 = vsub.f32 %v752, %v771
    %v803 = vsub.f32 %v753, %v771
    %v804 = vsub.f32 %v754, %v771
    %v805 = vsub.f32 %v755, %v771
    %v806 = vadd.f32 %v796, 1e-05
    %v807 = vadd.f32 %v797, 1e-05
    %v808 = vrsqrt.pop %v806
    %v809 = vrsqrt.pop %v807
    %v810 = vmul.f32 %v798, %v808
    %v811 = vmul.f32 %v799, %v808
    %v812 = vmul.f32 %v800, %v808
    %v813 = vmul.f32 %v801, %v808
    %v814 = vmul.f32 %v802, %v809
    %v815 = vmul.f32 %v803, %v809
    %v816 = vmul.f32 %v804, %v809
    %v817 = vmul.f32 %v805, %v809
    %v818 = vpack.c.bf16 %v814, %v810
    %v819 = vpack.c.bf16 %v815, %v811
    %v820 = vpack.c.bf16 %v816, %v812
    %v821 = vpack.c.bf16 %v817, %v813
    %v823 = vlaneseq
    %v824 = vshrl.u32 %v823, 7
    %v825 = vsub.s32 0, %v824
    %v826 = vrot.slane %v172, %v825
    %v891 = vunpack.c.l.b16 %v109
    %v892 = vunpack.c.l.b16 %v110
    %v893 = vunpack.c.l.b16 %v111
    %v894 = vunpack.c.l.b16 %v112
    %v895 = vunpack.c.l.b16 %v113
    %v896 = vunpack.c.l.b16 %v114
    %v897 = vunpack.c.l.b16 %v115
    %v898 = vunpack.c.l.b16 %v116
    %v899 = vunpack.c.l.b16 %v117
    %v900 = vunpack.c.l.b16 %v118
    %v901 = vunpack.c.l.b16 %v119
    %v902 = vunpack.c.l.b16 %v120
    %v903 = vunpack.c.l.b16 %v121
    %v904 = vunpack.c.l.b16 %v122
    %v905 = vunpack.c.l.b16 %v123
    %v906 = vunpack.c.l.b16 %v124
    %v907 = vunpack.c.l.b16 %v125
    %v908 = vunpack.c.l.b16 %v126
    %v909 = vunpack.c.l.b16 %v127
    %v910 = vunpack.c.l.b16 %v128
    %v911 = vunpack.c.l.b16 %v129
    %v912 = vunpack.c.l.b16 %v130
    %v913 = vunpack.c.l.b16 %v131
    %v914 = vunpack.c.l.b16 %v132
    %v915 = vunpack.c.l.b16 %v133
    %v916 = vunpack.c.l.b16 %v134
    %v917 = vunpack.c.l.b16 %v135
    %v918 = vunpack.c.l.b16 %v136
    %v919 = vunpack.c.l.b16 %v137
    %v920 = vunpack.c.l.b16 %v138
    %v921 = vunpack.c.l.b16 %v139
    %v922 = vunpack.c.l.b16 %v140
    %v923 = vunpack.c.l.b16 %v141
    %v924 = vunpack.c.l.b16 %v142
    %v925 = vunpack.c.l.b16 %v143
    %v926 = vunpack.c.l.b16 %v144
    %v927 = vunpack.c.l.b16 %v145
    %v928 = vunpack.c.l.b16 %v146
    %v929 = vunpack.c.l.b16 %v147
    %v930 = vunpack.c.l.b16 %v148
    %v931 = vunpack.c.l.b16 %v149
    %v932 = vunpack.c.l.b16 %v150
    %v933 = vunpack.c.l.b16 %v151
    %v934 = vunpack.c.l.b16 %v152
    %v935 = vunpack.c.l.b16 %v153
    %v936 = vunpack.c.l.b16 %v154
    %v937 = vunpack.c.l.b16 %v155
    %v938 = vunpack.c.l.b16 %v156
    %v939 = vunpack.c.l.b16 %v157
    %v940 = vunpack.c.l.b16 %v158
    %v941 = vunpack.c.l.b16 %v159
    %v942 = vunpack.c.l.b16 %v160
    %v943 = vunpack.c.l.b16 %v161
    %v944 = vunpack.c.l.b16 %v162
    %v945 = vunpack.c.l.b16 %v163
    %v946 = vunpack.c.l.b16 %v164
    %v947 = vunpack.c.l.b16 %v165
    %v948 = vunpack.c.l.b16 %v166
    %v949 = vunpack.c.l.b16 %v167
    %v950 = vunpack.c.l.b16 %v168
    %v951 = vunpack.c.l.b16 %v169
    %v952 = vunpack.c.l.b16 %v170
    %v953 = vunpack.c.l.b16 %v171
    %v954 = vpack.c.b16 %v892, %v891
    %v955 = vpack.c.b16 %v894, %v893
    %v956 = vpack.c.b16 %v896, %v895
    %v957 = vpack.c.b16 %v898, %v897
    %v958 = vpack.c.b16 %v900, %v899
    %v959 = vpack.c.b16 %v902, %v901
    %v960 = vpack.c.b16 %v904, %v903
    %v961 = vpack.c.b16 %v906, %v905
    %v962 = vpack.c.b16 %v908, %v907
    %v963 = vpack.c.b16 %v910, %v909
    %v964 = vpack.c.b16 %v912, %v911
    %v965 = vpack.c.b16 %v914, %v913
    %v966 = vpack.c.b16 %v916, %v915
    %v967 = vpack.c.b16 %v918, %v917
    %v968 = vpack.c.b16 %v920, %v919
    %v969 = vpack.c.b16 %v922, %v921
    %v970 = vpack.c.b16 %v924, %v923
    %v971 = vpack.c.b16 %v926, %v925
    %v972 = vpack.c.b16 %v928, %v927
    %v973 = vpack.c.b16 %v930, %v929
    %v974 = vpack.c.b16 %v932, %v931
    %v975 = vpack.c.b16 %v934, %v933
    %v976 = vpack.c.b16 %v936, %v935
    %v977 = vpack.c.b16 %v938, %v937
    %v978 = vpack.c.b16 %v940, %v939
    %v979 = vpack.c.b16 %v942, %v941
    %v980 = vpack.c.b16 %v944, %v943
    %v981 = vpack.c.b16 %v946, %v945
    %v982 = vpack.c.b16 %v948, %v947
    %v983 = vpack.c.b16 %v950, %v949
    %v984 = vpack.c.b16 %v952, %v951
    %v985 = vpack.c.b16 %v953, %v953
    %v1018 = vsel %vm758, %v821, 0
    %vm1020 = vcmask 1041408
    %v1022 = vsel %vm1020, %v985, 0
    %1024 = vmatprep.subr.bf16.mxu0 0
    %1025 = vmatpush1.bf16.msra.mxu0 %v954
    %1026 = vmatprep.subr.bf16.mxu0 0
    %1027 = vmatpush1.bf16.msra.mxu0 %v955
    %1028 = vmatprep.subr.bf16.mxu0 0
    %1029 = vmatpush1.bf16.msra.mxu0 %v956
    %1030 = vmatprep.subr.bf16.mxu0 0
    %1031 = vmatpush1.bf16.msra.mxu0 %v957
    %1032 = vmatprep.subr.bf16.mxu0 0
    %1033 = vmatpush1.bf16.msra.mxu0 %v958
    %1034 = vmatprep.subr.bf16.mxu0 0
    %1035 = vmatpush1.bf16.msra.mxu0 %v959
    %1036 = vmatprep.subr.bf16.mxu0 0
    %1037 = vmatpush1.bf16.msra.mxu0 %v960
    %1038 = vmatprep.subr.bf16.mxu0 0
    %1039 = vmatpush1.bf16.msra.mxu0 %v961
    %1040 = vmatprep.subr.bf16.mxu0 0
    %1041 = vmatpush1.bf16.msra.mxu0 %v962
    %1042 = vmatprep.subr.bf16.mxu0 0
    %1043 = vmatpush1.bf16.msra.mxu0 %v963
    %1044 = vmatprep.subr.bf16.mxu0 0
    %1045 = vmatpush1.bf16.msra.mxu0 %v964
    %1046 = vmatprep.subr.bf16.mxu0 0
    %1047 = vmatpush1.bf16.msra.mxu0 %v965
    %1048 = vmatprep.subr.bf16.mxu0 0
    %1049 = vmatpush1.bf16.msra.mxu0 %v966
    %1050 = vmatprep.subr.bf16.mxu0 0
    %1051 = vmatpush1.bf16.msra.mxu0 %v967
    %1052 = vmatprep.subr.bf16.mxu0 0
    %1053 = vmatpush1.bf16.msra.mxu0 %v968
    %1054 = vmatprep.subr.bf16.mxu0 0
    %1055 = vmatpush1.bf16.msra.mxu0 %v969
    %1056 = vmatprep.mubr.bf16.mxu0 %v819
    %1057 = vmatmul.mubr.bf16.gmra.mrb[0].mxu0 %v818
    %v1058 = vpop.f32.mrb[0].mxu0
    %v1059 = vadd.f32 %v826, %v1058
    %v1060 = vpop.f32.mrb[0].mxu0
    %v1061 = vpop.f32.mrb[0].mxu0
    %v1062 = vadd.f32 %v826, %v1061
    %v1063 = vpop.f32.mrb[0].mxu0
    %1064 = vdwg.mxu0
    %1065 = vmatprep.subr.bf16.mxu0 0
    %1066 = vmatpush1.bf16.msra.mxu0 %v970
    %1067 = vmatprep.subr.bf16.mxu0 0
    %1068 = vmatpush1.bf16.msra.mxu0 %v971
    %1069 = vmatprep.subr.bf16.mxu0 0
    %1070 = vmatpush1.bf16.msra.mxu0 %v972
    %1071 = vmatprep.subr.bf16.mxu0 0
    %1072 = vmatpush1.bf16.msra.mxu0 %v973
    %1073 = vmatprep.subr.bf16.mxu0 0
    %1074 = vmatpush1.bf16.msra.mxu0 %v974
    %1075 = vmatprep.subr.bf16.mxu0 0
    %1076 = vmatpush1.bf16.msra.mxu0 %v975
    %1077 = vmatprep.subr.bf16.mxu0 0
    %1078 = vmatpush1.bf16.msra.mxu0 %v976
    %1079 = vmatprep.subr.bf16.mxu0 0
    %1080 = vmatpush1.bf16.msra.mxu0 %v977
    %1081 = vmatprep.subr.bf16.mxu0 0
    %1082 = vmatpush1.bf16.msra.mxu0 %v978
    %1083 = vmatprep.subr.bf16.mxu0 0
    %1084 = vmatpush1.bf16.msra.mxu0 %v979
    %1085 = vmatprep.subr.bf16.mxu0 0
    %1086 = vmatpush1.bf16.msra.mxu0 %v980
    %1087 = vmatprep.subr.bf16.mxu0 0
    %1088 = vmatpush1.bf16.msra.mxu0 %v981
    %1089 = vmatprep.subr.bf16.mxu0 0
    %1090 = vmatpush1.bf16.msra.mxu0 %v982
    %1091 = vmatprep.subr.bf16.mxu0 0
    %1092 = vmatpush1.bf16.msra.mxu0 %v983
    %1093 = vmatprep.subr.bf16.mxu0 0
    %1094 = vmatpush1.bf16.msra.mxu0 %v984
    %1095 = vmatprep.subr.bf16.mxu0 0
    %1096 = vmatpush1.bf16.msra.mxu0 %v1022
    %1097 = vmatprep.mubr.bf16.mxu0 %v1018
    %1098 = vmatmul.mubr.bf16.gmra.mrb[0].mxu0 %v820
    %v1099 = vpop.f32.mrb[0].mxu0
    %v1100 = vadd.f32 %v1059, %v1099
    %v1101 = vpop.f32.mrb[0].mxu0
    %v1102 = vpop.f32.mrb[0].mxu0
    %v1103 = vadd.f32 %v1062, %v1102
    %v1104 = vpop.f32.mrb[0].mxu0
    %1105 = vdwg.mxu0
    %1106 = vst [vmem:[%s7] sm:$0xff] %v1100
    %1107 = vst [vmem:[%s7 + $0x8] sm:$0xff] %v1103
    // Predicated region
    $region34: #{_lambda_.1} parent=1 // pred_check
      _
    $region35: #{_lambda_.1} parent=1 // pred_check_branch
      %1109 = sbr.rel (0) target = $region37
    $region36: #{_lambda_.1} parent=1 // pred_region
      _
    $region37: #{_lambda_.1} parent=1 // pred_fallthru
      _
    // Predicated region
    $region38: #{_lambda_.1} parent=1 // pred_check
      _
    $region39: #{_lambda_.1} parent=1 // pred_check_branch
      %1111 = sbr.rel (0) target = $region41
    $region40: #{_lambda_.1} parent=1 // pred_region
      _
    $region41: #{_lambda_.1} parent=1 // pred_fallthru
      _
    %1112 = vsyncpa [#allocation3], 1

</llo_original>
